<compile_context>
chip_gen: v6e
topology: v6e:2x2x1
jax: 0.10.0
libtpu: 0.0.40
codegen_flags: <defaults>
</compile_context>

<pallas_src>
import jax
import jax.numpy as jnp
from jax import lax
from jax.experimental import pallas as pl
from jax.experimental.pallas import tpu as pltpu

EPS = 1e-5  # PyTorch nn.LayerNorm default eps


# ----------------------------------------------------------------------------
# Kernel
# ----------------------------------------------------------------------------
def _layernorm_kernel(x_ref, w_ref, b_ref, o_ref):
    # x_ref: (row_tile, H)   w_ref/b_ref: (1, H) f32   o_ref: (row_tile, H)
    x = x_ref[...].astype(jnp.float32)
    inv_h = jnp.float32(1.0 / x.shape[-1])

    # Two-pass statistics in f32 (matches PyTorch numerics; no E[x^2]-E[x]^2
    # cancellation).  Rows are independent, so padded tail rows (garbage data)
    # cannot contaminate real rows and their stores are masked by the runtime.
    mean = jnp.sum(x, axis=-1, keepdims=True) * inv_h
    centered = x - mean
    var = jnp.sum(centered * centered, axis=-1, keepdims=True) * inv_h
    inv = lax.rsqrt(var + EPS)

    o_ref[...] = (centered * inv * w_ref[...] + b_ref[...]).astype(o_ref.dtype)


# ----------------------------------------------------------------------------
# Tile / VMEM policy
# ----------------------------------------------------------------------------
def _round_up(n, m):
    return -(-n // m) * m


def _vmem_capacity_bytes():
    try:
        return int(pltpu.get_tpu_info().vmem_capacity_bytes)
    except Exception:
        return 64 * 1024 * 1024  # conservative fallback: v7x per-TC VMEM


def _pick_row_tile(R, H, in_bytes, out_bytes, budget_bytes, max_rows=8192):
    """Largest sublane-aligned row tile whose full working set fits budget.

    Working set per grid step:
      2x double-buffered input tile + 2x double-buffered output tile (DMA'd)
      + ~4 full-tile f32 intermediates inside the kernel body.
    """
    per_row = H * (2 * in_bytes + 2 * out_bytes + 4 * 4)
    rt = (budget_bytes // per_row) // 8 * 8
    rt = max(8, min(max_rows, rt))
    rt = min(rt, max(8, _round_up(R, 8)))  # never larger than needed
    return int(rt)


# ----------------------------------------------------------------------------
# Wrappers
# ----------------------------------------------------------------------------
def layer_norm_pallas(x, weight, bias, *, row_tile=None, vmem_limit_bytes=None):
    """LayerNorm over the last dimension of x (any leading dims), via Pallas."""
    orig_shape = x.shape
    H = orig_shape[-1]
    x2 = x.reshape(-1, H)
    R = x2.shape[0]

    vmem_cap = _vmem_capacity_bytes()
    if vmem_limit_bytes is None:
        # ~75% of physical VMEM: 96 MiB on v5e/v6e (128 MiB parts), 48 MiB on
        # v7x (64 MiB per TensorCore) — headroom for double-buffering slack.
        vmem_limit_bytes = (vmem_cap * 3) // 4
    if row_tile is None:
        itemsize = jnp.dtype(x2.dtype).itemsize
        row_tile = _pick_row_tile(R, H, itemsize, itemsize,
                                  budget_bytes=vmem_cap // 2)

    # Pre-cast affine params once (hoisted out of the per-tile loop).
    w2 = weight.astype(jnp.float32).reshape(1, H)
    b2 = bias.astype(jnp.float32).reshape(1, H)

    out = pl.pallas_call(
        _layernorm_kernel,
        out_shape=jax.ShapeDtypeStruct((R, H), x.dtype),
        grid_spec=pltpu.PrefetchScalarGridSpec(
            num_scalar_prefetch=0,
            grid=(pl.cdiv(R, row_tile),),
            in_specs=[
                pl.BlockSpec((row_tile, H), lambda i: (i, 0)),
                pl.BlockSpec((1, H), lambda i: (0, 0)),
                pl.BlockSpec((1, H), lambda i: (0, 0)),
            ],
            out_specs=pl.BlockSpec((row_tile, H), lambda i: (i, 0)),
        ),
        compiler_params=pltpu.CompilerParams(
            dimension_semantics=("parallel",),
            vmem_limit_bytes=int(vmem_limit_bytes),
        ),
    )(x2, w2, b2)
    return out.reshape(orig_shape)


def _layer_norm_xla(x, weight, bias):
    """Plain-XLA LayerNorm (used as small-H fallback and as reference)."""
    x32 = x.astype(jnp.float32)
    mean = jnp.mean(x32, axis=-1, keepdims=True)
    var = jnp.mean((x32 - mean) ** 2, axis=-1, keepdims=True)
    y = (x32 - mean) * lax.rsqrt(var + EPS)
    y = y * weight.astype(jnp.float32) + bias.astype(jnp.float32)
    return y.astype(x.dtype)


def layer_norm(x, weight, bias, *, row_tile=None, vmem_limit_bytes=None,
               min_pallas_h=128):
    """Public entry point: Pallas kernel for lane-dense H, XLA for tiny H."""
    H = x.shape[-1]
    if H < min_pallas_h:
        # With H < 128 only H of 128 lanes per vreg are used and the output
        # stores become masked vst.msk; plain XLA is the faster choice here.
        # (layer_norm_pallas is still correct for any H — see demo below.)
        return _layer_norm_xla(x, weight, bias)
    return layer_norm_pallas(x, weight, bias, row_tile=row_tile,
                             vmem_limit_bytes=vmem_limit_bytes)


class LinearNormalization:
    """JAX/Pallas equivalent of the PyTorch LinearNormalization module."""

    def __init__(self, normalized_shape, key=None):
        if isinstance(normalized_shape, int):
            normalized_shape = (normalized_shape,)
        assert len(normalized_shape) == 1, "only last-dim LayerNorm supported here"
        H = normalized_shape[0]
        if key is None:
            # PyTorch default init: weight = 1, bias = 0
            self.weight = jnp.ones((H,), jnp.float32)
            self.bias = jnp.zeros((H,), jnp.float32)
        else:
            kw, kb = jax.random.split(key)
            # deterministic non-trivial affine params (to exercise scale/shift)
            self.weight = 1.0 + 0.1 * jax.random.normal(kw, (H,), jnp.float32)
            self.bias = 0.1 * jax.random.normal(kb, (H,), jnp.float32)

    def __call__(self, x, _unused=None):
        return layer_norm(x, self.weight, self.bias)


# ----------------------------------------------------------------------------
# Demo / self-test
# ----------------------------------------------------------------------------
if __name__ == "__main__":
    key = jax.random.PRNGKey(0)
    kx, kparams, kx2, kx3, kx4 = jax.random.split(key, 5)

    # 1) Primary case: lane-dense hidden, Pallas path.
    batch, seq, hidden = 2, 8, 256
    module = LinearNormalization(hidden, key=kparams)
    x = jax.random.normal(kx, (batch, seq, hidden), jnp.float32)
    out = jax.block_until_ready(module(x, None))  # second arg ignored, as in PyTorch forward
    ref = _layer_norm_xla(x, module.weight, module.bias)
    assert out.shape == x.shape
    assert jnp.allclose(out, ref, atol=1e-4, rtol=1e-4), "mismatch (primary)"

    # 2) Row count that is NOT a multiple of the row tile: cdiv grid with a
    #    padded (masked) tail block and multiple grid steps.
    x2 = jax.random.normal(kx2, (3, 5, hidden), jnp.float32)  # 15 rows
    out2 = jax.block_until_ready(
        layer_norm_pallas(x2, module.weight, module.bias, row_tile=8))
    ref2 = _layer_norm_xla(x2, module.weight, module.bias)
    assert jnp.allclose(out2, ref2, atol=1e-4, rtol=1e-4), "mismatch (padded block)"

    # 3) Small H (H=32): default entry point uses the XLA fallback, but the
    #    Pallas kernel itself also handles it correctly — exercise both.
    module3 = LinearNormalization(32, key=kparams)
    x3 = jax.random.normal(kx3, (2, 8, 32), jnp.float32)
    out3a = jax.block_until_ready(module3(x3, None))                      # fallback path
    out3b = jax.block_until_ready(
        layer_norm_pallas(x3, module3.weight, module3.bias))              # Pallas path
    ref3 = _layer_norm_xla(x3, module3.weight, module3.bias)
    assert jnp.allclose(out3a, ref3, atol=1e-4, rtol=1e-4), "mismatch (small-H fallback)"
    assert jnp.allclose(out3b, ref3, atol=1e-4, rtol=1e-4), "mismatch (small-H pallas)"

    # 4) bf16 input (f32 stats inside the kernel, bf16 output).
    x4 = jax.random.normal(kx4, (2, 8, hidden), jnp.float32).astype(jnp.bfloat16)
    out4 = jax.block_until_ready(module(x4, None))
    ref4 = _layer_norm_xla(x4, module.weight, module.bias)
    assert out4.dtype == jnp.bfloat16
    assert jnp.allclose(out4.astype(jnp.float32), ref4.astype(jnp.float32),
                        atol=3e-2, rtol=3e-2), "mismatch (bf16)"

    print("KERNEL_OK")
</pallas_src>

<mosaic_0001>
module attributes {stable_mosaic.version = 11 : i64} {
  func.func @_layernorm_kernel(%arg0: i32, %arg1: memref<16x256xf32, #tpu.memory_space<vmem>>, %arg2: memref<1x256xf32, #tpu.memory_space<vmem>>, %arg3: memref<1x256xf32, #tpu.memory_space<vmem>>, %arg4: memref<16x256xf32, #tpu.memory_space<vmem>>) attributes {dimension_semantics = [#tpu.dimension_semantics<parallel>], iteration_bounds = array<i64: 1>, scalar_prefetch = 0 : i64, scratch_operands = 0 : i64, tpu.core_type = #tpu.core_type<tc>, window_params = [{transform_indices = @transform_0, window_bounds = array<i64: 16, 256>}, {pipeline_mode = #tpu.pipeline_mode<synchronous>, transform_indices = @transform_1, window_bounds = array<i64: 1, 256>}, {pipeline_mode = #tpu.pipeline_mode<synchronous>, transform_indices = @transform_2, window_bounds = array<i64: 1, 256>}, {transform_indices = @transform_3, window_bounds = array<i64: 16, 256>}]} {
    %c0 = arith.constant 0 : index
    %c0_0 = arith.constant 0 : index
    %0 = vector.load %arg1[%c0, %c0_0] : memref<16x256xf32, #tpu.memory_space<vmem>>, vector<16x256xf32>
    %cst = arith.constant dense<0.000000e+00> : vector<16xf32>
    %1 = vector.multi_reduction <add>, %0, %cst [1] : vector<16x256xf32> to vector<16xf32>
    %2 = vector.shape_cast %1 : vector<16xf32> to vector<16x1xf32>
    %cst_1 = arith.constant 3.906250e-03 : f32
    %3 = vector.broadcast %cst_1 : f32 to vector<16x1xf32>
    %4 = arith.mulf %2, %3 : vector<16x1xf32>
    %5 = vector.broadcast %4 : vector<16x1xf32> to vector<16x256xf32>
    %6 = arith.subf %0, %5 : vector<16x256xf32>
    %7 = arith.mulf %6, %6 : vector<16x256xf32>
    %cst_2 = arith.constant dense<0.000000e+00> : vector<16xf32>
    %8 = vector.multi_reduction <add>, %7, %cst_2 [1] : vector<16x256xf32> to vector<16xf32>
    %9 = vector.shape_cast %8 : vector<16xf32> to vector<16x1xf32>
    %cst_3 = arith.constant 3.906250e-03 : f32
    %10 = vector.broadcast %cst_3 : f32 to vector<16x1xf32>
    %11 = arith.mulf %9, %10 : vector<16x1xf32>
    %cst_4 = arith.constant 9.99999974E-6 : f32
    %12 = vector.broadcast %cst_4 : f32 to vector<16x1xf32>
    %13 = arith.addf %11, %12 : vector<16x1xf32>
    %14 = math.rsqrt %13 : vector<16x1xf32>
    %15 = vector.broadcast %14 : vector<16x1xf32> to vector<16x256xf32>
    %16 = arith.mulf %6, %15 : vector<16x256xf32>
    %c0_5 = arith.constant 0 : index
    %c0_6 = arith.constant 0 : index
    %17 = vector.load %arg2[%c0_5, %c0_6] : memref<1x256xf32, #tpu.memory_space<vmem>>, vector<1x256xf32>
    %18 = vector.broadcast %17 : vector<1x256xf32> to vector<16x256xf32>
    %19 = arith.mulf %16, %18 : vector<16x256xf32>
    %c0_7 = arith.constant 0 : index
    %c0_8 = arith.constant 0 : index
    %20 = vector.load %arg3[%c0_7, %c0_8] : memref<1x256xf32, #tpu.memory_space<vmem>>, vector<1x256xf32>
    %21 = vector.broadcast %20 : vector<1x256xf32> to vector<16x256xf32>
    %22 = arith.addf %19, %21 : vector<16x256xf32>
    %c0_9 = arith.constant 0 : index
    %c0_10 = arith.constant 0 : index
    %23 = vector.load %arg4[%c0_9, %c0_10] : memref<16x256xf32, #tpu.memory_space<vmem>>, vector<16x256xf32>
    tpu.vector_store %arg4[%c0_9, %c0_10], %22 {strides = array<i32>} : memref<16x256xf32, #tpu.memory_space<vmem>>, vector<16x256xf32>,
    return
  }
  func.func @transform_0(%arg0: i32) -> (i32, i32) {
    %c0_i32 = arith.constant 0 : i32
    %c0_i32_0 = arith.constant 0 : i32
    return %arg0, %c0_i32 : i32, i32
  }
  func.func @transform_1(%arg0: i32) -> (i32, i32) {
    %c0_i32 = arith.constant 0 : i32
    %c0_i32_0 = arith.constant 0 : i32
    %c0_i32_1 = arith.constant 0 : i32
    return %c0_i32, %c0_i32_0 : i32, i32
  }
  func.func @transform_2(%arg0: i32) -> (i32, i32) {
    %c0_i32 = arith.constant 0 : i32
    %c0_i32_0 = arith.constant 0 : i32
    %c0_i32_1 = arith.constant 0 : i32
    return %c0_i32, %c0_i32_0 : i32, i32
  }
  func.func @transform_3(%arg0: i32) -> (i32, i32) {
    %c0_i32 = arith.constant 0 : i32
    %c0_i32_0 = arith.constant 0 : i32
    return %arg0, %c0_i32 : i32, i32
  }
}

</mosaic_0001>

<llo_original>
// kernel: tpu_custom_call.1
$region0: #{tpu_custom_call.1}
  #allocation0 [shape = 'u32[]', space=smem, size = 0x4, offset = 0x4, fixed_abs, tag = 'smem constant byte address 0x4 - core index']
  #allocation1 [shape = 'u32[144,128]{1,0:T(1,128)}', space=vmem, size = 0x12000, scoped, tag = 'internal scratch']
  %s0 = inlined_call_operand.hbm [shape: f32[16,256], index: 0, kind: input, shape index: {}]
  %s1 = inlined_call_operand.hbm [shape: f32[1,256], index: 1, kind: input, shape index: {}]
  %s2 = inlined_call_operand.vmem [shape: f32[1,256], index: 2, kind: input, shape index: {}]
  %s3 = inlined_call_operand.hbm [shape: f32[16,256], index: 3, kind: output, shape index: {}]
  %s4 = sld [smem:[#allocation0]]
  $region30: #{tpu_custom_call.1} parent=0
    _
  %s6 = ssub.s32 1, %s4
  %s7 = scalar_select 0, %s6, %s4
  $region1: #{tpu_custom_call.1} parent=0
    #allocation2 [shape = 'u8[16384]{0}', space=vmem, size = 0x4000, scoped, tag = 'input window, operand 0, single buffered']
    #allocation3 [shape = 's32[1]{0}', space=sflag, size = 0x4, scoped, tag = 'scoped memory for tpu_custom_call.1']
    #allocation4 [shape = 's32[1]{0}', space=sflag, size = 0x4, scoped, tag = 'scoped memory for tpu_custom_call.1']
    #allocation5 [shape = 'u8[1024]{0}', space=vmem, size = 0x400, scoped, tag = 'input window, operand 1, single buffered']
    #allocation6 [shape = 's32[1]{0}', space=sflag, size = 0x4, scoped, tag = 'scoped memory for tpu_custom_call.1']
    #allocation7 [shape = 'u8[16384]{0}', space=vmem, size = 0x4000, scoped, tag = 'output window, operand 0, single buffered']
    %8 = vsyncpa [#allocation3], 0
    %9 = vsyncpa [#allocation6], 0
    %10 = vsyncpa [#allocation4], 0
    // Predicated region
    $region2: #{tpu_custom_call.1} parent=1 // pred_check
      _
    $region3: #{tpu_custom_call.1} parent=1 // pred_check_branch
      %12 = sbr.rel (0) target = $region5
    $region4: #{tpu_custom_call.1} parent=1 // pred_region
      %s14 = ssub.s32 512, 512
      %15 = vsyncadd [#allocation3], %s14
      %s16 = sshll.u32 [#allocation2], 4
      %s17 = int_to_ptr.vmem [resolvable:$true] %s16
      %22 = dma.hbm_to_vmem [thread:$0]  %s0, 512, %s17, [#allocation3], 256, 256, 16
    $region5: #{tpu_custom_call.1} parent=1 // pred_fallthru
      _
    // Predicated region
    $region6: #{tpu_custom_call.1} parent=1 // pred_check
      _
    $region7: #{tpu_custom_call.1} parent=1 // pred_check_branch
      %24 = sbr.rel (0) target = $region9
    $region8: #{tpu_custom_call.1} parent=1 // pred_region
      %s26 = ssub.s32 32, 32
      %27 = vsyncadd [#allocation6], %s26
      %s29 = sshll.u32 [#allocation5], 4
      %s30 = int_to_ptr.vmem [resolvable:$true] %s29
      %32 = dma.hbm_to_vmem [thread:$0]  %s1, 32, %s30, [#allocation6]
    $region9: #{tpu_custom_call.1} parent=1 // pred_fallthru
      _
    // Predicated region
    $region10: #{tpu_custom_call.1} parent=1 // pred_check
      _
    $region11: #{tpu_custom_call.1} parent=1 // pred_check_branch
      %34 = sbr.rel (0) target = $region13
    $region12: #{tpu_custom_call.1} parent=1 // pred_region
      _
    $region13: #{tpu_custom_call.1} parent=1 // pred_fallthru
      _
    // Predicated region
    $region14: #{tpu_custom_call.1} parent=1 // pred_check
      _
    $region15: #{tpu_custom_call.1} parent=1 // pred_check_branch
      %36 = sbr.rel (0) target = $region17
    $region16: #{tpu_custom_call.1} parent=1 // pred_region
      %37 = dma.done [#allocation3], 512
    $region17: #{tpu_custom_call.1} parent=1 // pred_fallthru
      _
    // Predicated region
    $region18: #{tpu_custom_call.1} parent=1 // pred_check
      _
    $region19: #{tpu_custom_call.1} parent=1 // pred_check_branch
      %39 = sbr.rel (0) target = $region21
    $region20: #{tpu_custom_call.1} parent=1 // pred_region
      %40 = dma.done [#allocation6], 32
    $region21: #{tpu_custom_call.1} parent=1 // pred_fallthru
      _
    %v41 = vld [vmem:[#allocation2] sm:$0xff]
    %v42 = vld [vmem:[#allocation2 + $0x8] sm:$0xff]
    %v43 = vld [vmem:[#allocation2 + $0x10] sm:$0xff]
    %v44 = vld [vmem:[#allocation2 + $0x18] sm:$0xff]
    %v45 = vadd.f32 %v41, %v42
    %46 = vadd.xlane.f32.xlu0 %v45
    %v47 = vpop.xlane.xlu0 %46
    %v48 = vadd.f32 %v43, %v44
    %49 = vadd.xlane.f32.xlu0 %v48
    %v50 = vpop.xlane.xlu0 %49
    %v51 = vmul.f32 %v47, 0.00390625
    %v52 = vmul.f32 %v50, 0.00390625
    %v53 = vsub.f32 %v41, %v51
    %v54 = vsub.f32 %v42, %v51
    %v55 = vsub.f32 %v43, %v52
    %v56 = vsub.f32 %v44, %v52
    %v57 = vmul.f32 %v53, %v53
    %v58 = vmul.f32 %v54, %v54
    %v59 = vmul.f32 %v55, %v55
    %v60 = vmul.f32 %v56, %v56
    %v61 = vadd.f32 %v57, %v58
    %62 = vadd.xlane.f32.xlu0 %v61
    %v63 = vpop.xlane.xlu0 %62
    %v64 = vadd.f32 %v59, %v60
    %65 = vadd.xlane.f32.xlu0 %v64
    %v66 = vpop.xlane.xlu0 %65
    %v67 = vmul.f32 %v63, 0.00390625
    %v68 = vmul.f32 %v66, 0.00390625
    %v69 = vadd.f32 %v67, 1e-05
    %v70 = vadd.f32 %v68, 1e-05
    %v71 = vrsqrt.pop %v69
    %v72 = vrsqrt.pop %v70
    %v73 = vmul.f32 %v53, %v71
    %v74 = vmul.f32 %v54, %v71
    %v75 = vmul.f32 %v55, %v72
    %v76 = vmul.f32 %v56, %v72
    %v77 = vld [vmem:[#allocation5] sm:$0x3]
    %v79 = vlaneseq
    %v80 = vshrl.u32 %v79, 7
    %v81 = vsub.s32 0, %v80
    %v82 = vrot.slane %v77, %v81
    %v83 = vlaneseq
    %v84 = vshrl.u32 %v83, 7
    %v85 = vsub.s32 1, %v84
    %v86 = vrot.slane %v77, %v85
    %v89 = vmul.f32 %v73, %v82
    %v90 = vmul.f32 %v74, %v86
    %v91 = vmul.f32 %v75, %v82
    %v92 = vmul.f32 %v76, %v86
    %v93 = vld [vmem:[%s2] sm:$0x3]
    %v95 = vlaneseq
    %v96 = vshrl.u32 %v95, 7
    %v97 = vsub.s32 0, %v96
    %v98 = vrot.slane %v93, %v97
    %v99 = vlaneseq
    %v100 = vshrl.u32 %v99, 7
    %v101 = vsub.s32 1, %v100
    %v102 = vrot.slane %v93, %v101
    %v105 = vadd.f32 %v89, %v98
    %v106 = vadd.f32 %v90, %v102
    %v107 = vadd.f32 %v91, %v98
    %v108 = vadd.f32 %v92, %v102
    %109 = vst [vmem:[#allocation7] sm:$0xff] %v105
    %110 = vst [vmem:[#allocation7 + $0x8] sm:$0xff] %v106
    %111 = vst [vmem:[#allocation7 + $0x10] sm:$0xff] %v107
    %112 = vst [vmem:[#allocation7 + $0x18] sm:$0xff] %v108
    // Predicated region
    $region22: #{tpu_custom_call.1} parent=1 // pred_check
      _
    $region23: #{tpu_custom_call.1} parent=1 // pred_check_branch
      %114 = sbr.rel (0) target = $region25
    $region24: #{tpu_custom_call.1} parent=1 // pred_region
      %s116 = ssub.s32 512, 512
      %117 = vsyncadd [#allocation4], %s116
      %s118 = sshll.u32 [#allocation7], 4
      %s119 = int_to_ptr.vmem [resolvable:$true] %s118
      %124 = dma.vmem_to_hbm [thread:$0]  %s119, 512, %s3, [#allocation4], 256, 256, 16
    $region25: #{tpu_custom_call.1} parent=1 // pred_fallthru
      _
    // Predicated region
    $region26: #{tpu_custom_call.1} parent=1 // pred_check
      _
    $region27: #{tpu_custom_call.1} parent=1 // pred_check_branch
      %126 = sbr.rel (0) target = $region29
    $region28: #{tpu_custom_call.1} parent=1 // pred_region
      %127 = dma.done [#allocation4], 512
    $region29: #{tpu_custom_call.1} parent=1 // pred_fallthru
      _
    %128 = vsyncpa [#allocation3], 1
    %129 = vsyncpa [#allocation6], 1
    %130 = vsyncpa [#allocation4], 1

</llo_original>
